<compile_context>
chip_gen: v7x
topology: tpu7x:2x2x1
jax: 0.10.0
libtpu: 0.0.40
codegen_flags: <defaults>
</compile_context>

<pallas_src>
import jax
import jax.numpy as jnp
from jax.experimental import pallas as pl
from jax.experimental.pallas import tpu as pltpu


# ----------------------------------------------------------------------------
# Fused Pallas kernel: (1-3 GCN layers) -> mean-pool -> classifier -> log_softmax
# ----------------------------------------------------------------------------
def _fused_gcn_kernel(num_layers, slope):
    def kernel(idx_ref, adj_ref, feat_ref, *rest):
        del idx_ref  # only consumed by the BlockSpec index_maps (gather)
        w_refs = rest[:num_layers]
        wc_ref, bc_ref, out_ref = rest[num_layers:num_layers + 3]

        adj_bf = adj_ref[...].astype(jnp.bfloat16)          # [N, N] bf16 MXU operand
        h = feat_ref[...]                                    # [N, Din] f32

        for w_ref in w_refs:
            din, dout = w_ref.shape
            h_bf = h.astype(jnp.bfloat16)
            w_bf = w_ref[...].astype(jnp.bfloat16)
            if din <= dout:
                # (A @ H) @ W  — cheaper when Din <= Dout
                ah = jnp.dot(adj_bf, h_bf, preferred_element_type=jnp.float32)
                z = jnp.dot(ah.astype(jnp.bfloat16), w_bf,
                            preferred_element_type=jnp.float32)
            else:
                # A @ (H @ W)  — cheaper when Dout < Din
                hw = jnp.dot(h_bf, w_bf, preferred_element_type=jnp.float32)
                z = jnp.dot(adj_bf, hw.astype(jnp.bfloat16),
                            preferred_element_type=jnp.float32)
            h = jnp.where(z >= 0.0, z, slope * z)            # leaky_relu in f32

        # head: mean over nodes -> linear(+bias) -> log_softmax (all f32 VPU/EUP)
        m = jnp.mean(h, axis=0, keepdims=True)               # [1, H]
        logits = jnp.dot(m.astype(jnp.bfloat16),
                         wc_ref[...].astype(jnp.bfloat16),
                         preferred_element_type=jnp.float32) + bc_ref[...]
        mx = jnp.max(logits, axis=1, keepdims=True)
        s = logits - mx
        lse = jnp.log(jnp.sum(jnp.exp(s), axis=1, keepdims=True))
        out_ref[...] = (s - lse).astype(out_ref.dtype)       # [1, OUT_PAD]
    return kernel


def gcn_forward(action, index, features, adjs_norm, params, slope):
    """Matches GCN.forward((action, index)) in eval mode.

    index: scalar -> returns [1, out_dim]; 1-D array of graph ids -> [B, out_dim].
    """
    num_layers = {0: 1, 1: 2, 2: 3}[int(action)]
    indices = jnp.atleast_1d(jnp.asarray(index, dtype=jnp.int32))
    batch = int(indices.shape[0])
    _, n, din = features.shape
    hid = params["w1"].shape[1]
    out_dim = params["wc"].shape[1]
    out_pad = int(pl.cdiv(out_dim, 128)) * 128               # lane-dense output

    # Pad classifier to 128 lanes: zero weight columns + -1e30 bias keep the
    # real-class log-probs exactly unchanged after the final slice.
    wc_pad = jnp.zeros((hid, out_pad), jnp.float32).at[:, :out_dim].set(params["wc"])
    bc_pad = jnp.full((1, out_pad), -1e30, jnp.float32).at[:, :out_dim].set(params["bc"])

    weights = [params["w1"], params["w2"], params["w3"]][:num_layers]

    in_specs = (
        [pl.BlockSpec((None, n, n), lambda b, idx: (idx[b], 0, 0)),      # adj gather
         pl.BlockSpec((None, n, din), lambda b, idx: (idx[b], 0, 0))]    # feat gather
        + [pl.BlockSpec(w.shape, lambda b, idx: (0, 0)) for w in weights]
        + [pl.BlockSpec((hid, out_pad), lambda b, idx: (0, 0)),
           pl.BlockSpec((1, out_pad), lambda b, idx: (0, 0))]
    )
    out_specs = pl.BlockSpec((None, 1, out_pad), lambda b, idx: (b, 0, 0))

    # Advisory cost estimate (per-graph layer matmuls + head), times batch.
    layer_dims = [(din, hid)] + [(hid, hid)] * (num_layers - 1)
    flops = 0
    for di, do in layer_dims:
        flops += 2 * n * n * min(di, do) + 2 * n * di * do
    flops += 2 * hid * out_pad + 6 * out_pad
    flops *= batch
    bytes_accessed = batch * 4 * (n * n + n * din + out_pad)
    bytes_accessed += 4 * (sum(int(w.size) for w in weights) + hid * out_pad + out_pad)
    cost = pl.CostEstimate(flops=flops,
                           transcendentals=batch * (out_pad + 1),
                           bytes_accessed=bytes_accessed)

    out = pl.pallas_call(
        _fused_gcn_kernel(num_layers, float(slope)),
        out_shape=jax.ShapeDtypeStruct((batch, 1, out_pad), jnp.float32),
        grid_spec=pltpu.PrefetchScalarGridSpec(
            num_scalar_prefetch=1,
            grid=(batch,),
            in_specs=in_specs,
            out_specs=out_specs,
        ),
        compiler_params=pltpu.CompilerParams(dimension_semantics=("parallel",)),
        cost_estimate=cost,
    )(indices, adjs_norm, features, *weights, wc_pad, bc_pad)

    return out[:, 0, :out_dim]   # [B, out_dim] log-probs ([1, out_dim] for scalar index)


# ----------------------------------------------------------------------------
# Glue (plain JAX): adjacency normalization, init, pure-JAX reference
# ----------------------------------------------------------------------------
def adj_process(adjs):
    """D^{-1/2} (A + I, positives binarized) D^{-1/2}, per network."""
    _, n, _ = adjs.shape
    a = adjs + jnp.eye(n, dtype=adjs.dtype)
    a = jnp.where(a > 0.0, 1.0, a)
    deg = jnp.sum(a, axis=-1)
    dinv = jnp.power(deg, -0.5)
    dinv = jnp.where(jnp.isinf(dinv), 0.0, dinv)
    return dinv[:, :, None] * a * dinv[:, None, :]


def init_params(key, dim_in, hid_dim, out_dim):
    """nn.Linear-style init; weights stored pre-transposed as [fan_in, fan_out]."""
    ks = jax.random.split(key, 5)

    def lin(k, fan_in, fan_out):
        bound = 1.0 / jnp.sqrt(fan_in)
        return jax.random.uniform(k, (fan_in, fan_out), jnp.float32, -bound, bound)

    w1 = lin(ks[0], dim_in, hid_dim)
    w2 = lin(ks[1], hid_dim, hid_dim)
    w3 = lin(ks[2], hid_dim, hid_dim)
    wc = lin(ks[3], hid_dim, out_dim)
    bc = jax.random.uniform(ks[4], (1, out_dim), jnp.float32,
                            -1.0 / jnp.sqrt(hid_dim), 1.0 / jnp.sqrt(hid_dim))
    return dict(w1=w1, w2=w2, w3=w3, wc=wc, bc=bc)


def _leaky(x, slope):
    return jnp.where(x >= 0.0, x, slope * x)


def gcn_forward_ref(action, index, features, adjs_norm, params, slope):
    """Pure-JAX f32 reference of the same forward (for correctness checking)."""
    idx = jnp.atleast_1d(jnp.asarray(index, dtype=jnp.int32))
    h = features[idx]                                   # [B, N, Din]
    adj = adjs_norm[idx]                                # [B, N, N]
    h = _leaky(jnp.einsum("bij,bjd->bid", adj, h) @ params["w1"], slope)
    if action >= 1:
        h = _leaky(jnp.einsum("bij,bjd->bid", adj, h) @ params["w2"], slope)
    if action == 2:
        h = _leaky(jnp.einsum("bij,bjd->bid", adj, h) @ params["w3"], slope)
    m = jnp.mean(h, axis=1)                             # [B, H]
    logits = m @ params["wc"] + params["bc"]
    return jax.nn.log_softmax(logits, axis=1)


# ----------------------------------------------------------------------------
if __name__ == "__main__":
    key = jax.random.PRNGKey(0)
    k_feat, k_adj, k_param = jax.random.split(key, 3)

    net_num, n_num, dim_in = 3, 16, 8
    hid_dim, out_dim = 32, 4
    slope, drop = 0.2, 0.5  # drop unused (eval mode)

    features = jax.random.normal(k_feat, (net_num, n_num, dim_in), jnp.float32)
    adjs_raw = (jax.random.uniform(k_adj, (net_num, n_num, n_num)) > 0.7).astype(jnp.float32)
    adjs_raw = jnp.maximum(adjs_raw, jnp.transpose(adjs_raw, (0, 2, 1)))
    adjs_norm = adj_process(adjs_raw)

    params = init_params(k_param, dim_in, hid_dim, out_dim)

    # Scalar index: exercise all three action branches.
    for action in (0, 1, 2):
        out = gcn_forward(action, 1, features, adjs_norm, params, slope)
        out = jax.block_until_ready(out)
        assert out.shape == (1, out_dim)
        assert abs(float(jnp.sum(jnp.exp(out))) - 1.0) < 1e-4
        ref = gcn_forward_ref(action, 1, features, adjs_norm, params, slope)
        assert jnp.allclose(out, ref, atol=1e-1), (out, ref)

    # Batched indices: one fused launch, parallel grid over graphs.
    idx = jnp.array([0, 1, 2], dtype=jnp.int32)
    out = jax.block_until_ready(gcn_forward(2, idx, features, adjs_norm, params, slope))
    assert out.shape == (net_num, out_dim)
    assert bool(jnp.allclose(jnp.sum(jnp.exp(out), axis=1), 1.0, atol=1e-4))
    ref = gcn_forward_ref(2, idx, features, adjs_norm, params, slope)
    assert jnp.allclose(out, ref, atol=1e-1), (out, ref)

    print("KERNEL_OK")
</pallas_src>

<mosaic_0001>
module attributes {stable_mosaic.version = 11 : i64} {
  func.func @kernel(%arg0: i32, %arg1: memref<1xi32, #tpu.memory_space<smem>>, %arg2: memref<1x16x16xf32, #tpu.memory_space<vmem>>, %arg3: memref<1x16x8xf32, #tpu.memory_space<vmem>>, %arg4: memref<8x32xf32, #tpu.memory_space<vmem>>, %arg5: memref<32x128xf32, #tpu.memory_space<vmem>>, %arg6: memref<1x128xf32, #tpu.memory_space<vmem>>, %arg7: memref<1x1x128xf32, #tpu.memory_space<vmem>>) attributes {dimension_semantics = [#tpu.dimension_semantics<parallel>], iteration_bounds = array<i64: 1>, scalar_prefetch = 1 : i64, scratch_operands = 0 : i64, tpu.core_type = #tpu.core_type<tc>, window_params = [{transform_indices = @transform_0, window_bounds = array<i64: 1, 16, 16>}, {transform_indices = @transform_1, window_bounds = array<i64: 1, 16, 8>}, {pipeline_mode = #tpu.pipeline_mode<synchronous>, transform_indices = @transform_2, window_bounds = array<i64: 8, 32>}, {pipeline_mode = #tpu.pipeline_mode<synchronous>, transform_indices = @transform_3, window_bounds = array<i64: 32, 128>}, {pipeline_mode = #tpu.pipeline_mode<synchronous>, transform_indices = @transform_4, window_bounds = array<i64: 1, 128>}, {transform_indices = @transform_5, window_bounds = array<i64: 1, 1, 128>}]} {
    %c0 = arith.constant 0 : index
    %c0_0 = arith.constant 0 : index
    %c0_1 = arith.constant 0 : index
    %0 = vector.load %arg2[%c0, %c0_0, %c0_1] : memref<1x16x16xf32, #tpu.memory_space<vmem>>, vector<1x16x16xf32>
    %1 = vector.shape_cast %0 : vector<1x16x16xf32> to vector<16x16xf32>
    %2 = arith.truncf %1 : vector<16x16xf32> to vector<16x16xbf16>
    %c0_2 = arith.constant 0 : index
    %c0_3 = arith.constant 0 : index
    %c0_4 = arith.constant 0 : index
    %3 = vector.load %arg3[%c0_2, %c0_3, %c0_4] : memref<1x16x8xf32, #tpu.memory_space<vmem>>, vector<1x16x8xf32>
    %4 = vector.shape_cast %3 : vector<1x16x8xf32> to vector<16x8xf32>
    %5 = arith.truncf %4 : vector<16x8xf32> to vector<16x8xbf16>
    %c0_5 = arith.constant 0 : index
    %c0_6 = arith.constant 0 : index
    %6 = vector.load %arg4[%c0_5, %c0_6] : memref<8x32xf32, #tpu.memory_space<vmem>>, vector<8x32xf32>
    %7 = arith.truncf %6 : vector<8x32xf32> to vector<8x32xbf16>
    %cst = arith.constant dense<0.000000e+00> : vector<16x8xf32>
    %8 = tpu.matmul %2, %5, %cst {dimension_numbers = #tpu.dot_dimension_numbers<[1], [0], [0], [1], [0, 0, 1, 1], [], []>} : vector<16x16xbf16>, vector<16x8xbf16>, vector<16x8xf32> -> vector<16x8xf32>
    %9 = arith.truncf %8 : vector<16x8xf32> to vector<16x8xbf16>
    %cst_7 = arith.constant dense<0.000000e+00> : vector<16x32xf32>
    %10 = tpu.matmul %9, %7, %cst_7 {dimension_numbers = #tpu.dot_dimension_numbers<[1], [0], [0], [1], [0, 0, 1, 1], [], []>} : vector<16x8xbf16>, vector<8x32xbf16>, vector<16x32xf32> -> vector<16x32xf32>
    %cst_8 = arith.constant 0.000000e+00 : f32
    %11 = vector.broadcast %cst_8 : f32 to vector<16x32xf32>
    %12 = arith.cmpf oge, %10, %11 : vector<16x32xf32>
    %cst_9 = arith.constant 2.000000e-01 : f32
    %13 = vector.broadcast %cst_9 : f32 to vector<16x32xf32>
    %14 = arith.mulf %13, %10 : vector<16x32xf32>
    %15 = arith.select %12, %10, %14 : vector<16x32xi1>, vector<16x32xf32>
    %cst_10 = arith.constant dense<0.000000e+00> : vector<32xf32>
    %16 = vector.multi_reduction <add>, %15, %cst_10 [0] : vector<16x32xf32> to vector<32xf32>
    %17 = vector.shape_cast %16 : vector<32xf32> to vector<1x32xf32>
    %cst_11 = arith.constant 1.600000e+01 : f32
    %18 = vector.broadcast %cst_11 : f32 to vector<1x32xf32>
    %19 = arith.divf %17, %18 : vector<1x32xf32>
    %20 = arith.truncf %19 : vector<1x32xf32> to vector<1x32xbf16>
    %c0_12 = arith.constant 0 : index
    %c0_13 = arith.constant 0 : index
    %21 = vector.load %arg5[%c0_12, %c0_13] : memref<32x128xf32, #tpu.memory_space<vmem>>, vector<32x128xf32>
    %22 = arith.truncf %21 : vector<32x128xf32> to vector<32x128xbf16>
    %cst_14 = arith.constant dense<0.000000e+00> : vector<1x128xf32>
    %23 = tpu.matmul %20, %22, %cst_14 {dimension_numbers = #tpu.dot_dimension_numbers<[1], [0], [0], [1], [0, 0, 1, 1], [], []>} : vector<1x32xbf16>, vector<32x128xbf16>, vector<1x128xf32> -> vector<1x128xf32>
    %c0_15 = arith.constant 0 : index
    %c0_16 = arith.constant 0 : index
    %24 = vector.load %arg6[%c0_15, %c0_16] : memref<1x128xf32, #tpu.memory_space<vmem>>, vector<1x128xf32>
    %25 = arith.addf %23, %24 : vector<1x128xf32>
    %cst_17 = arith.constant dense<0xFF800000> : vector<1xf32>
    %26 = vector.multi_reduction <maximumf>, %25, %cst_17 [1] : vector<1x128xf32> to vector<1xf32>
    %27 = vector.shape_cast %26 : vector<1xf32> to vector<1x1xf32>
    %28 = vector.broadcast %27 : vector<1x1xf32> to vector<1x128xf32>
    %29 = arith.subf %25, %28 : vector<1x128xf32>
    %30 = math.exp %29 : vector<1x128xf32>
    %cst_18 = arith.constant dense<0.000000e+00> : vector<1xf32>
    %31 = vector.multi_reduction <add>, %30, %cst_18 [1] : vector<1x128xf32> to vector<1xf32>
    %32 = vector.shape_cast %31 : vector<1xf32> to vector<1x1xf32>
    %33 = math.log %32 : vector<1x1xf32>
    %34 = vector.broadcast %33 : vector<1x1xf32> to vector<1x128xf32>
    %35 = arith.subf %29, %34 : vector<1x128xf32>
    %c0_19 = arith.constant 0 : index
    %c0_20 = arith.constant 0 : index
    %c0_21 = arith.constant 0 : index
    %36 = vector.load %arg7[%c0_19, %c0_20, %c0_21] : memref<1x1x128xf32, #tpu.memory_space<vmem>>, vector<1x1x128xf32>
    %37 = vector.shape_cast %36 : vector<1x1x128xf32> to vector<1x128xf32>
    %38 = vector.shape_cast %35 : vector<1x128xf32> to vector<1x1x128xf32>
    tpu.vector_store %arg7[%c0_19, %c0_20, %c0_21], %38 {strides = array<i32>} : memref<1x1x128xf32, #tpu.memory_space<vmem>>, vector<1x1x128xf32>,
    return
  }
  func.func @transform_0(%arg0: i32, %arg1: memref<1xi32, #tpu.memory_space<smem>>) -> (i32, i32, i32) {
    %0 = arith.index_cast %arg0 : i32 to index
    %1 = memref.load %arg1[%0] : memref<1xi32, #tpu.memory_space<smem>>
    %c0_i32 = arith.constant 0 : i32
    %c0_i32_0 = arith.constant 0 : i32
    %c0_i32_1 = arith.constant 0 : i32
    return %1, %c0_i32, %c0_i32_0 : i32, i32, i32
  }
  func.func @transform_1(%arg0: i32, %arg1: memref<1xi32, #tpu.memory_space<smem>>) -> (i32, i32, i32) {
    %0 = arith.index_cast %arg0 : i32 to index
    %1 = memref.load %arg1[%0] : memref<1xi32, #tpu.memory_space<smem>>
    %c0_i32 = arith.constant 0 : i32
    %c0_i32_0 = arith.constant 0 : i32
    %c0_i32_1 = arith.constant 0 : i32
    return %1, %c0_i32, %c0_i32_0 : i32, i32, i32
  }
  func.func @transform_2(%arg0: i32, %arg1: memref<1xi32, #tpu.memory_space<smem>>) -> (i32, i32) {
    %c0_i32 = arith.constant 0 : i32
    %c0_i32_0 = arith.constant 0 : i32
    %c0_i32_1 = arith.constant 0 : i32
    return %c0_i32, %c0_i32_0 : i32, i32
  }
  func.func @transform_3(%arg0: i32, %arg1: memref<1xi32, #tpu.memory_space<smem>>) -> (i32, i32) {
    %c0_i32 = arith.constant 0 : i32
    %c0_i32_0 = arith.constant 0 : i32
    %c0_i32_1 = arith.constant 0 : i32
    return %c0_i32, %c0_i32_0 : i32, i32
  }
  func.func @transform_4(%arg0: i32, %arg1: memref<1xi32, #tpu.memory_space<smem>>) -> (i32, i32) {
    %c0_i32 = arith.constant 0 : i32
    %c0_i32_0 = arith.constant 0 : i32
    %c0_i32_1 = arith.constant 0 : i32
    return %c0_i32, %c0_i32_0 : i32, i32
  }
  func.func @transform_5(%arg0: i32, %arg1: memref<1xi32, #tpu.memory_space<smem>>) -> (i32, i32, i32) {
    %c0_i32 = arith.constant 0 : i32
    %c0_i32_0 = arith.constant 0 : i32
    %c0_i32_1 = arith.constant 0 : i32
    return %arg0, %c0_i32, %c0_i32_0 : i32, i32, i32
  }
}

</mosaic_0001>

<llo_original>
// kernel: tpu_custom_call.1
$region0: #{tpu_custom_call.1}
  #allocation0 [shape = 'u32[]', space=smem, size = 0x4, offset = 0x4, fixed_abs, tag = 'smem constant byte address 0x4 - core index']
  #allocation1 [shape = 'u32[144,128]{1,0:T(1,128)}', space=vmem, size = 0x12000, scoped, tag = 'internal scratch']
  #allocation2 [shape = 's32[1]{0}', space=sflag, size = 0x4, scoped, tag = 'scoped memory for tpu_custom_call.1']
  #allocation3 [shape = 's32[1]{0:T(128)S(6)}', space=smem, size = 0x200, scoped, tag = 'prefetched SMEM operand 0']
  %s0 = inlined_call_operand.<no memory space> [shape: s32[1], index: 0, kind: input, shape index: {}]
  %s1 = inlined_call_operand.vmem [shape: f32[3,16,16], index: 1, kind: input, shape index: {}]
  %s2 = inlined_call_operand.vmem [shape: f32[3,16,8], index: 2, kind: input, shape index: {}]
  %s3 = inlined_call_operand.hbm [shape: f32[8,32], index: 3, kind: input, shape index: {}]
  %s4 = inlined_call_operand.vmem [shape: f32[32,128], index: 4, kind: input, shape index: {}]
  %s5 = inlined_call_operand.vmem [shape: f32[1,128], index: 5, kind: input, shape index: {}]
  %s6 = inlined_call_operand.hbm [shape: f32[1,1,128], index: 6, kind: output, shape index: {}]
  %s7 = sld [smem:[#allocation0]]
  $region34: #{tpu_custom_call.1} parent=0
    _
  %s9 = ssub.s32 1, %s7
  %s10 = scalar_select 0, %s9, %s7
  %11 = sst [smem:[#allocation3]] %s0
  $region1: #{tpu_custom_call.1} parent=0
    #allocation4 [shape = 'u8[4096]{0}', space=vmem, size = 0x1000, scoped, tag = 'input window, operand 3, single buffered']
    #allocation5 [shape = 's32[1]{0}', space=sflag, size = 0x4, scoped, tag = 'scoped memory for tpu_custom_call.1']
    #allocation6 [shape = 's32[1]{0}', space=sflag, size = 0x4, scoped, tag = 'scoped memory for tpu_custom_call.1']
    #allocation7 [shape = 'u8[512]{0}', space=vmem, size = 0x400, scoped, tag = 'output window, operand 0, single buffered']
    %12 = vsyncpa [#allocation5], 0
    %13 = vsyncpa [#allocation6], 0
    // Predicated region
    $region2: #{tpu_custom_call.1} parent=1 // pred_check
      _
    $region3: #{tpu_custom_call.1} parent=1 // pred_check_branch
      %15 = sbr.rel (0) target = $region5
    $region4: #{tpu_custom_call.1} parent=1 // pred_region
      %s16 = sld [smem:[#allocation3]]
      %p17 = scmp.lt.s32.totalorder %s16, 2
      %s18 = scalar_select %p17, %s16, 2
      %s19 = smul.addr %s18, 2
      %s20 = smul.addr %s19, 8
      %s21 = scalar_lea.vmem %s1, %s20
      %s22 = sld [smem:[#allocation3]]
    $region5: #{tpu_custom_call.1} parent=1 // pred_fallthru
      _
    // Predicated region
    $region6: #{tpu_custom_call.1} parent=1 // pred_check
      _
    $region7: #{tpu_custom_call.1} parent=1 // pred_check_branch
      %24 = sbr.rel (0) target = $region9
    $region8: #{tpu_custom_call.1} parent=1 // pred_region
      %s25 = sld [smem:[#allocation3]]
      %p26 = scmp.lt.s32.totalorder %s25, 2
      %s27 = scalar_select %p26, %s25, 2
      %s28 = smul.addr %s27, 2
      %s29 = smul.addr %s28, 8
      %s30 = scalar_lea.vmem %s2, %s29
      %s31 = sld [smem:[#allocation3]]
    $region9: #{tpu_custom_call.1} parent=1 // pred_fallthru
      _
    // Predicated region
    $region10: #{tpu_custom_call.1} parent=1 // pred_check
      _
    $region11: #{tpu_custom_call.1} parent=1 // pred_check_branch
      %33 = sbr.rel (0) target = $region13
    $region12: #{tpu_custom_call.1} parent=1 // pred_region
      %s35 = ssub.s32 128, 128
      %36 = vsyncadd [#allocation5], %s35
      %s38 = sshll.u32 [#allocation4], 4
      %s39 = int_to_ptr.vmem [resolvable:$true] %s38
      %41 = dma.hbm_to_vmem [thread:$0]  %s3, 128, %s39, [#allocation5]
    $region13: #{tpu_custom_call.1} parent=1 // pred_fallthru
      _
    // Predicated region
    $region14: #{tpu_custom_call.1} parent=1 // pred_check
      _
    $region15: #{tpu_custom_call.1} parent=1 // pred_check_branch
      %43 = sbr.rel (0) target = $region17
    $region16: #{tpu_custom_call.1} parent=1 // pred_region
      _
    $region17: #{tpu_custom_call.1} parent=1 // pred_fallthru
      _
    // Predicated region
    $region18: #{tpu_custom_call.1} parent=1 // pred_check
      _
    $region19: #{tpu_custom_call.1} parent=1 // pred_check_branch
      %45 = sbr.rel (0) target = $region21
    $region20: #{tpu_custom_call.1} parent=1 // pred_region
      _
    $region21: #{tpu_custom_call.1} parent=1 // pred_fallthru
      _
    // Predicated region
    $region22: #{tpu_custom_call.1} parent=1 // pred_check
      _
    $region23: #{tpu_custom_call.1} parent=1 // pred_check_branch
      %47 = sbr.rel (0) target = $region25
    $region24: #{tpu_custom_call.1} parent=1 // pred_region
      %48 = dma.done [#allocation5], 128
    $region25: #{tpu_custom_call.1} parent=1 // pred_fallthru
      _
    %s49 = sld [smem:[#allocation3]]
    %p50 = scmp.lt.s32.totalorder %s49, 2
    %s51 = scalar_select %p50, %s49, 2
    %s52 = smul.addr %s51, 2
    %s53 = smul.addr %s52, 8
    %s54 = scalar_lea.vmem %s1, %s53
    %s55 = sld [smem:[#allocation3]]
    %p56 = scmp.lt.s32.totalorder %s55, 2
    %s57 = scalar_select %p56, %s55, 2
    %s58 = smul.addr %s57, 2
    %s59 = smul.addr %s58, 8
    %s60 = scalar_lea.vmem %s2, %s59
    %s61 = sld [smem:[#allocation3]]
    %p62 = scmp.lt.s32.totalorder %s61, 2
    %s63 = scalar_select %p62, %s61, 2
    %s64 = smul.addr %s63, 2
    %s65 = smul.addr %s64, 8
    %s66 = scalar_lea.vmem %s1, %s65
    %s67 = sld [smem:[#allocation3]]
    %s68 = sld [smem:[#allocation3]]
    %p69 = scmp.lt.s32.totalorder %s68, 2
    %s70 = scalar_select %p69, %s68, 2
    %s71 = smul.addr %s70, 2
    %s72 = smul.addr %s71, 8
    %s73 = scalar_lea.vmem %s2, %s72
    %s74 = sld [smem:[#allocation3]]
    %v76 = vld [vmem:[%s66] sm:$0xff]
    %v77 = vld [vmem:[%s66 + $0x8] sm:$0xff]
    %v78 = vpack.c.bf16 %v77, %v76
    %v79 = vld [vmem:[%s73] sm:$0xff]
    %v80 = vld [vmem:[%s73 + $0x8] sm:$0xff]
    %v81 = vpack.c.bf16 %v80, %v79
    %v82 = vld [vmem:[#allocation4] sm:$0xff]
    %v83 = vpack.c.bf16 %v82, %v82
    %vm84 = vcmask 130048
    %v86 = vsel %vm84, %v78, 0
    %88 = vmatprep.subr.bf16.mxu0 0
    %89 = vmatpush1.bf16.msra.mxu0 %v81
    %90 = vmatprep.subr.bf16.mxu0 0
    %91 = vmatpush1.bf16.msra.mxu0 0
    %92 = vmatprep.subr.bf16.mxu0 0
    %93 = vmatpush1.bf16.msra.mxu0 0
    %94 = vmatprep.subr.bf16.mxu0 0
    %95 = vmatpush1.bf16.msra.mxu0 0
    %96 = vmatprep.subr.bf16.mxu0 0
    %97 = vmatpush1.bf16.msra.mxu0 0
    %98 = vmatprep.subr.bf16.mxu0 0
    %99 = vmatpush1.bf16.msra.mxu0 0
    %100 = vmatprep.subr.bf16.mxu0 0
    %101 = vmatpush1.bf16.msra.mxu0 0
    %102 = vmatprep.subr.bf16.mxu0 0
    %103 = vmatpush1.bf16.msra.mxu0 0
    %104 = vmatprep.subr.bf16.mxu0 0
    %105 = vmatpush1.bf16.msra.mxu0 0
    %106 = vmatprep.subr.bf16.mxu0 0
    %107 = vmatpush1.bf16.msra.mxu0 0
    %108 = vmatprep.subr.bf16.mxu0 0
    %109 = vmatpush1.bf16.msra.mxu0 0
    %110 = vmatprep.subr.bf16.mxu0 0
    %111 = vmatpush1.bf16.msra.mxu0 0
    %112 = vmatprep.subr.bf16.mxu0 0
    %113 = vmatpush1.bf16.msra.mxu0 0
    %114 = vmatprep.subr.bf16.mxu0 0
    %115 = vmatpush1.bf16.msra.mxu0 0
    %116 = vmatprep.subr.bf16.mxu0 0
    %117 = vmatpush1.bf16.msra.mxu0 0
    %118 = vmatprep.subr.bf16.mxu0 0
    %119 = vmatpush1.bf16.msra.mxu0 0
    %120 = vmatprep.mubr.bf16.mxu0 0
    %121 = vmatmul.mubr.bf16.gmra.mrb[0].mxu0 %v86
    %v122 = vpop.f32.mrb[0].mxu0
    %v123 = vadd.f32 0.0, %v122
    %v124 = vpop.f32.mrb[0].mxu0
    %v125 = vpop.f32.mrb[0].mxu0
    %v126 = vadd.f32 0.0, %v125
    %v127 = vpop.f32.mrb[0].mxu0
    %128 = vdwg.mxu0
    %v129 = vpack.c.bf16 %v126, %v123
    %vm130 = vcmask 64512
    %v132 = vsel %vm130, %v129, 0
    %vm134 = vcmask 1043456
    %v136 = vsel %vm134, %v83, 0
    %138 = vmatprep.subr.bf16.mxu0 0
    %139 = vmatpush1.bf16.msra.mxu0 %v136
    %140 = vmatprep.subr.bf16.mxu0 0
    %141 = vmatpush1.bf16.msra.mxu0 0
    %142 = vmatprep.subr.bf16.mxu0 0
    %143 = vmatpush1.bf16.msra.mxu0 0
    %144 = vmatprep.subr.bf16.mxu0 0
    %145 = vmatpush1.bf16.msra.mxu0 0
    %146 = vmatprep.subr.bf16.mxu0 0
    %147 = vmatpush1.bf16.msra.mxu0 0
    %148 = vmatprep.subr.bf16.mxu0 0
    %149 = vmatpush1.bf16.msra.mxu0 0
    %150 = vmatprep.subr.bf16.mxu0 0
    %151 = vmatpush1.bf16.msra.mxu0 0
    %152 = vmatprep.subr.bf16.mxu0 0
    %153 = vmatpush1.bf16.msra.mxu0 0
    %154 = vmatprep.subr.bf16.mxu0 0
    %155 = vmatpush1.bf16.msra.mxu0 0
    %156 = vmatprep.subr.bf16.mxu0 0
    %157 = vmatpush1.bf16.msra.mxu0 0
    %158 = vmatprep.subr.bf16.mxu0 0
    %159 = vmatpush1.bf16.msra.mxu0 0
    %160 = vmatprep.subr.bf16.mxu0 0
    %161 = vmatpush1.bf16.msra.mxu0 0
    %162 = vmatprep.subr.bf16.mxu0 0
    %163 = vmatpush1.bf16.msra.mxu0 0
    %164 = vmatprep.subr.bf16.mxu0 0
    %165 = vmatpush1.bf16.msra.mxu0 0
    %166 = vmatprep.subr.bf16.mxu0 0
    %167 = vmatpush1.bf16.msra.mxu0 0
    %168 = vmatprep.subr.bf16.mxu0 0
    %169 = vmatpush1.bf16.msra.mxu0 0
    %170 = vmatprep.mubr.bf16.mxu0 0
    %171 = vmatmul.mubr.bf16.gmra.mrb[0].mxu0 %v132
    %v172 = vpop.f32.mrb[0].mxu0
    %v173 = vadd.f32 0.0, %v172
    %v174 = vpop.f32.mrb[0].mxu0
    %v175 = vpop.f32.mrb[0].mxu0
    %v176 = vadd.f32 0.0, %v175
    %v177 = vpop.f32.mrb[0].mxu0
    %178 = vdwg.mxu0
    %vm179 = vcmp.ge.f32.partialorder %v173, 0.0
    %vm180 = vcmp.ge.f32.partialorder %v176, 0.0
    %v181 = vmul.f32 %v173, 0.2
    %v182 = vmul.f32 %v176, 0.2
    %v183 = vsel %vm179, %v173, %v181
    %v184 = vsel %vm180, %v176, %v182
    %vm185 = vcmask 261120
    %v186 = vsel %vm185, %v183, 0.0
    %v187 = vsel %vm185, %v184, 0.0
    %v188 = vadd.f32 %v186, %v187
    %v189 = vrot.slane %v188, 4
    %v190 = vadd.f32 %v188, %v189
    %v191 = vrot.slane %v190, 2
    %v192 = vadd.f32 %v190, %v191
    %v193 = vrot.slane %v192, 1
    %v194 = vadd.f32 %v192, %v193
    %v195 = vrcp.pop 16.0
    %v196 = vmul.f32 %v194, %v195
    %v197 = vpack.c.bf16 %v196, %v196
    %v198 = vld [vmem:[%s4] sm:$0xff]
    %v199 = vld [vmem:[%s4 + $0x8] sm:$0xff]
    %v200 = vld [vmem:[%s4 + $0x10] sm:$0xff]
    %v201 = vld [vmem:[%s4 + $0x18] sm:$0xff]
    %v202 = vpack.c.bf16 %v199, %v198
    %v203 = vpack.c.bf16 %v201, %v200
    %v204 = vld [vmem:[%s5] sm:$0x1]
    %v206 = vsel %vm185, %v197, 0
    %208 = vmatprep.subr.bf16.mxu0 0
    %209 = vmatpush1.bf16.msra.mxu0 %v202
    %210 = vmatprep.subr.bf16.mxu0 0
    %211 = vmatpush1.bf16.msra.mxu0 %v203
    %212 = vmatprep.subr.bf16.mxu0 0
    %213 = vmatpush1.bf16.msra.mxu0 0
    %214 = vmatprep.subr.bf16.mxu0 0
    %215 = vmatpush1.bf16.msra.mxu0 0
    %216 = vmatprep.subr.bf16.mxu0 0
    %217 = vmatpush1.bf16.msra.mxu0 0
    %218 = vmatprep.subr.bf16.mxu0 0
    %219 = vmatpush1.bf16.msra.mxu0 0
    %220 = vmatprep.subr.bf16.mxu0 0
    %221 = vmatpush1.bf16.msra.mxu0 0
    %222 = vmatprep.subr.bf16.mxu0 0
    %223 = vmatpush1.bf16.msra.mxu0 0
    %224 = vmatprep.subr.bf16.mxu0 0
    %225 = vmatpush1.bf16.msra.mxu0 0
    %226 = vmatprep.subr.bf16.mxu0 0
    %227 = vmatpush1.bf16.msra.mxu0 0
    %228 = vmatprep.subr.bf16.mxu0 0
    %229 = vmatpush1.bf16.msra.mxu0 0
    %230 = vmatprep.subr.bf16.mxu0 0
    %231 = vmatpush1.bf16.msra.mxu0 0
    %232 = vmatprep.subr.bf16.mxu0 0
    %233 = vmatpush1.bf16.msra.mxu0 0
    %234 = vmatprep.subr.bf16.mxu0 0
    %235 = vmatpush1.bf16.msra.mxu0 0
    %236 = vmatprep.subr.bf16.mxu0 0
    %237 = vmatpush1.bf16.msra.mxu0 0
    %238 = vmatprep.subr.bf16.mxu0 0
    %239 = vmatpush1.bf16.msra.mxu0 0
    %240 = vmatprep.mubr.bf16.mxu0 0
    %241 = vmatmul.mubr.bf16.gmra.mrb[0].mxu0 %v206
    %v242 = vpop.f32.mrb[0].mxu0
    %v243 = vadd.f32 %v204, %v242
    %v244 = vpop.f32.mrb[0].mxu0
    %v245 = vpop.f32.mrb[0].mxu0
    %v246 = vpop.f32.mrb[0].mxu0
    %247 = vdwg.mxu0
    %vm248 = vcmask 1040384
    %v249 = vsel %vm248, %v243, -inf
    %250 = vmax.xlane.f32.xlu0 %v249
    %v251 = vpop.xlane.xlu0 %250
    %v252 = vsub.f32 %v243, %v251
    %v253 = vmul.f32 %v252, 1.442695
    %v254 = vpow.pop %v253
    %v255 = vsel %vm248, %v254, 0.0
    %256 = vadd.xlane.f32.xlu0 %v255
    %v257 = vpop.xlane.xlu0 %256
    %v258 = vlog2.pop %v257
    %v259 = vmul.f32 %v258, 0.6931472
    %v260 = vsub.f32 %v252, %v259
    %261 = vst [vmem:[#allocation7] sm:$0x1] %v260
    // Predicated region
    $region26: #{tpu_custom_call.1} parent=1 // pred_check
      _
    $region27: #{tpu_custom_call.1} parent=1 // pred_check_branch
      %263 = sbr.rel (0) target = $region29
    $region28: #{tpu_custom_call.1} parent=1 // pred_region
      %s265 = ssub.s32 16, 16
      %266 = vsyncadd [#allocation6], %s265
      %s268 = sshll.u32 [#allocation7], 4
      %s269 = int_to_ptr.vmem [resolvable:$true] %s268
      %271 = dma.vmem_to_hbm [thread:$0]  %s269, 16, %s6, [#allocation6]
    $region29: #{tpu_custom_call.1} parent=1 // pred_fallthru
      _
    // Predicated region
    $region30: #{tpu_custom_call.1} parent=1 // pred_check
      _
    $region31: #{tpu_custom_call.1} parent=1 // pred_check_branch
      %273 = sbr.rel (0) target = $region33
    $region32: #{tpu_custom_call.1} parent=1 // pred_region
      %274 = dma.done [#allocation6], 16
    $region33: #{tpu_custom_call.1} parent=1 // pred_fallthru
      _
    %275 = vsyncpa [#allocation5], 1
    %276 = vsyncpa [#allocation6], 1

</llo_original>
